<compile_context>
chip_gen: v7x
topology: tpu7x:2x2x1
jax: 0.10.0
libtpu: 0.0.40
codegen_flags: <defaults>
</compile_context>

<pallas_src>
import functools

import jax
import jax.numpy as jnp
from jax.experimental import pallas as pl
from jax.experimental.pallas import tpu as pltpu

LANE = 128


def _round_up(x, m):
    return ((x + m - 1) // m) * m


def _default_compute_dtype(dtype):
    """bf16 natively on v6e/v7x; f32 upcast on v5e (no bf16 VPU/EUP) and for f32."""
    if dtype == jnp.bfloat16:
        try:
            kind = jax.devices()[0].device_kind.lower()
        except Exception:  # pragma: no cover - defensive
            kind = ""
        if "v5" in kind:
            return jnp.float32
        return jnp.bfloat16
    return jnp.float32


def _lif_step_kernel(cand_ref, forget_ref, mem_ref, syn_ref,
                     spk_ref, mem_out_ref, syn_out_ref,
                     *, threshold, beta, compute_dtype):
    cdt = compute_dtype
    one = jnp.asarray(1, cdt)
    zero = jnp.asarray(0, cdt)
    thr = jnp.asarray(threshold, cdt)
    bet = jnp.asarray(beta, cdt)

    cand = cand_ref[...].astype(cdt)
    forget = forget_ref[...].astype(cdt)
    mem = mem_ref[...].astype(cdt)
    syn = syn_ref[...].astype(cdt)

    syn_new = forget * syn + (one - forget) * cand
    over = mem > thr                                   # Heaviside(mem - threshold)
    mem_new = bet * mem + syn_new - jnp.where(over, thr, zero)

    spk_ref[...] = over.astype(spk_ref.dtype)
    mem_out_ref[...] = mem_new.astype(mem_out_ref.dtype)
    syn_out_ref[...] = syn_new.astype(syn_out_ref.dtype)


def _lif_fresh_syn_kernel(cand_ref, forget_ref, syn_out_ref, *, compute_dtype):
    # Fresh-state fast path (mem == syn == 0, threshold >= 0):
    #   syn' = (1 - f) * c ; spk == 0 ; mem' == syn'   -> only syn' is written.
    cdt = compute_dtype
    one = jnp.asarray(1, cdt)
    cand = cand_ref[...].astype(cdt)
    forget = forget_ref[...].astype(cdt)
    syn_out_ref[...] = ((one - forget) * cand).astype(syn_out_ref.dtype)


def lif_v1_forward(candidate, forget, mem=None, syn=None,
                   *, threshold=1.0, alpha=0.7, beta=0.5,
                   spike_dtype=None, compute_dtype=None):
    """Pallas implementation of LIFv1.forward.

    candidate / forget: arrays of identical shape (NCHW in the demo).
    mem / syn: previous state; None -> zero-init (the module's shape-mismatch
    reset path), handled by a reduced-bandwidth fast-path kernel.
    Returns (spk, mem_new, syn_new); spk dtype is `spike_dtype` (default:
    candidate's dtype), mem_new/syn_new keep candidate's dtype/shape.
    """
    del alpha  # forward uses Heaviside; alpha only affects the surrogate gradient
    assert candidate.shape == forget.shape
    orig_shape = candidate.shape
    dtype = candidate.dtype
    spike_dtype = jnp.dtype(dtype if spike_dtype is None else spike_dtype)
    cdt = (_default_compute_dtype(dtype) if compute_dtype is None
           else jnp.dtype(compute_dtype))
    threshold = float(threshold)
    beta = float(beta)
    n = candidate.size

    itemsize = jnp.dtype(dtype).itemsize
    min_item = max(1, min(itemsize, spike_dtype.itemsize))
    sub_mult = max(8, 32 // min_item)                  # 8 f32 / 16 bf16 / 32 int8
    # ~2 MiB per stream per block; 7 streams x 2 bufs ~= 28 MiB (fits v7x's 32 MiB
    # default scoped limit; vmem_limit raised anyway for v5e's 16 MiB default).
    target_rows = max(sub_mult, (2 << 20) // (LANE * itemsize))

    rows_raw = pl.cdiv(n, LANE)
    if rows_raw <= sub_mult:
        rows, row_tile = sub_mult, sub_mult            # tiny tensor: one padded block
    else:
        rows = rows_raw                                # no round-up: partial last block
        eighth = _round_up(pl.cdiv(rows, 8), sub_mult)  # aim for ~8 grid steps
        row_tile = max(sub_mult, min(target_rows, eighth))
        steps = pl.cdiv(rows, row_tile)
        if steps > 2 and steps % 2:                    # prefer an even step count (2 TCs)
            alt = _round_up(pl.cdiv(rows, steps + 1), sub_mult)
            if alt >= sub_mult and pl.cdiv(rows, alt) % 2 == 0:
                row_tile = alt
    n_pad = rows * LANE
    grid = (pl.cdiv(rows, row_tile),)

    def to_slab(x):
        flat = x.astype(dtype).reshape(-1)
        if n_pad != n:  # trace-time check: pad (HBM copy) only when n % 128 != 0
            flat = jnp.pad(flat, (0, n_pad - n))
        return flat.reshape(rows, LANE)

    def from_slab(x):
        if n_pad != n:
            return x.reshape(-1)[:n].reshape(orig_shape)
        return x.reshape(orig_shape)

    spec = pl.BlockSpec((row_tile, LANE), lambda i: (i, 0))
    cparams = pltpu.CompilerParams(
        dimension_semantics=("parallel",),
        vmem_limit_bytes=40 << 20,
    )

    fresh_fast = (mem is None) and (syn is None) and (threshold >= 0.0)

    if fresh_fast:
        kernel = functools.partial(_lif_fresh_syn_kernel, compute_dtype=cdt)
        syn_slab = pl.pallas_call(
            kernel,
            out_shape=jax.ShapeDtypeStruct((rows, LANE), dtype),
            grid_spec=pltpu.PrefetchScalarGridSpec(
                num_scalar_prefetch=0, grid=grid,
                in_specs=[spec, spec], out_specs=spec),
            compiler_params=cparams,
        )(to_slab(candidate), to_slab(forget))
        syn_new = from_slab(syn_slab)
        spk = jnp.zeros(orig_shape, spike_dtype)
        return spk, syn_new, syn_new                  # mem' == syn' for zero state

    # General path (also covers the rare threshold < 0 fresh case via zero-init).
    if mem is None:
        mem = jnp.zeros(orig_shape, dtype)
    if syn is None:
        syn = jnp.zeros(orig_shape, dtype)

    kernel = functools.partial(_lif_step_kernel, threshold=threshold, beta=beta,
                               compute_dtype=cdt)
    out_sds = jax.ShapeDtypeStruct((rows, LANE), dtype)
    spk_sds = jax.ShapeDtypeStruct((rows, LANE), spike_dtype)
    spk2, mem2, syn2 = pl.pallas_call(
        kernel,
        out_shape=(spk_sds, out_sds, out_sds),
        grid_spec=pltpu.PrefetchScalarGridSpec(
            num_scalar_prefetch=0, grid=grid,
            in_specs=[spec, spec, spec, spec],
            out_specs=[spec, spec, spec]),
        # Update recurrent state in place (mem -> mem_out, syn -> syn_out); fully
        # effective when the caller jits + donates and no wrapper pad copy occurs.
        input_output_aliases={2: 1, 3: 2},
        compiler_params=cparams,
    )(to_slab(candidate), to_slab(forget), to_slab(mem), to_slab(syn))
    return from_slab(spk2), from_slab(mem2), from_slab(syn2)


def _reference(candidate, forget, mem, syn, threshold=1.0, beta=0.5):
    syn_new = forget * syn + (1.0 - forget) * candidate
    spk = (mem - threshold > 0.0).astype(candidate.dtype)
    mem_new = beta * mem + syn_new - threshold * spk
    return spk, mem_new, syn_new


if __name__ == "__main__":
    import numpy as np

    def run_case(key, shape):
        k1, k2, k3 = jax.random.split(key, 3)
        candidate = jax.random.normal(k1, shape, jnp.float32)
        forget = jax.nn.sigmoid(jax.random.normal(k2, shape, jnp.float32))
        candidate2 = jax.random.normal(k3, shape, jnp.float32)

        # Step 1: fresh state (module's shape-mismatch zero-init path -> fast path).
        spk1, mem1, syn1 = lif_v1_forward(candidate, forget)
        # Step 2: recurrent step carrying the state, new candidate.
        spk2, mem2, syn2 = lif_v1_forward(candidate2, forget, mem=mem1, syn=syn1)
        jax.block_until_ready((spk1, mem1, syn1, spk2, mem2, syn2))

        zeros = jnp.zeros_like(candidate)
        r_spk1, r_mem1, r_syn1 = _reference(candidate, forget, zeros, zeros)
        r_spk2, r_mem2, r_syn2 = _reference(candidate2, forget, r_mem1, r_syn1)

        for got, ref in [(spk1, r_spk1), (mem1, r_mem1), (syn1, r_syn1),
                         (spk2, r_spk2), (mem2, r_mem2), (syn2, r_syn2)]:
            np.testing.assert_allclose(np.asarray(got), np.asarray(ref),
                                       rtol=1e-6, atol=1e-6)

    root = jax.random.PRNGKey(0)
    keys = jax.random.split(root, 3)
    run_case(keys[0], (2, 4, 16, 16))   # NCHW, aligned (n % 128 == 0, even grid)
    run_case(keys[1], (2, 4, 16, 19))   # partial last block (rows=19, tile=8), no pad
    run_case(keys[2], (2, 3, 5, 7))     # tiny + n % 128 != 0 -> pad path

    print("KERNEL_OK")
</pallas_src>

<mosaic_0001>
module attributes {stable_mosaic.version = 11 : i64} {
  func.func @_lif_fresh_syn_kernel(%arg0: i32, %arg1: memref<8x128xf32, #tpu.memory_space<vmem>>, %arg2: memref<8x128xf32, #tpu.memory_space<vmem>>, %arg3: memref<8x128xf32, #tpu.memory_space<vmem>>) attributes {dimension_semantics = [#tpu.dimension_semantics<parallel>], iteration_bounds = array<i64: 2>, scalar_prefetch = 0 : i64, scratch_operands = 0 : i64, tpu.core_type = #tpu.core_type<tc>, window_params = [{transform_indices = @transform_0, window_bounds = array<i64: 8, 128>}, {transform_indices = @transform_1, window_bounds = array<i64: 8, 128>}, {transform_indices = @transform_2, window_bounds = array<i64: 8, 128>}]} {
    %c0 = arith.constant 0 : index
    %c0_0 = arith.constant 0 : index
    %0 = vector.load %arg1[%c0, %c0_0] : memref<8x128xf32, #tpu.memory_space<vmem>>, vector<8x128xf32>
    %c0_1 = arith.constant 0 : index
    %c0_2 = arith.constant 0 : index
    %1 = vector.load %arg2[%c0_1, %c0_2] : memref<8x128xf32, #tpu.memory_space<vmem>>, vector<8x128xf32>
    %cst = arith.constant 1.000000e+00 : f32
    %2 = vector.broadcast %cst : f32 to vector<8x128xf32>
    %3 = arith.subf %2, %1 : vector<8x128xf32>
    %4 = arith.mulf %3, %0 : vector<8x128xf32>
    %c0_3 = arith.constant 0 : index
    %c0_4 = arith.constant 0 : index
    %5 = vector.load %arg3[%c0_3, %c0_4] : memref<8x128xf32, #tpu.memory_space<vmem>>, vector<8x128xf32>
    tpu.vector_store %arg3[%c0_3, %c0_4], %4 {strides = array<i32>} : memref<8x128xf32, #tpu.memory_space<vmem>>, vector<8x128xf32>,
    return
  }
  func.func @transform_0(%arg0: i32) -> (i32, i32) {
    %c0_i32 = arith.constant 0 : i32
    %c0_i32_0 = arith.constant 0 : i32
    return %arg0, %c0_i32 : i32, i32
  }
  func.func @transform_1(%arg0: i32) -> (i32, i32) {
    %c0_i32 = arith.constant 0 : i32
    %c0_i32_0 = arith.constant 0 : i32
    return %arg0, %c0_i32 : i32, i32
  }
  func.func @transform_2(%arg0: i32) -> (i32, i32) {
    %c0_i32 = arith.constant 0 : i32
    %c0_i32_0 = arith.constant 0 : i32
    return %arg0, %c0_i32 : i32, i32
  }
}

</mosaic_0001>

<llo_original>
// kernel: tpu_custom_call.1
$region0: #{tpu_custom_call.1}
  #allocation0 [shape = 'u32[]', space=smem, size = 0x4, offset = 0x4, fixed_abs, tag = 'smem constant byte address 0x4 - core index']
  #allocation1 [shape = 'u32[144,128]{1,0:T(1,128)}', space=vmem, size = 0x12000, scoped, tag = 'internal scratch']
  %s0 = inlined_call_operand.hbm [shape: f32[16,128], index: 0, kind: input, shape index: {}]
  %s1 = inlined_call_operand.hbm [shape: f32[16,128], index: 1, kind: input, shape index: {}]
  %s2 = inlined_call_operand.hbm [shape: f32[16,128], index: 2, kind: output, shape index: {}]
  %s3 = sld [smem:[#allocation0]]
  $region49: #{tpu_custom_call.1} parent=0
    _
  %s5 = ssub.s32 1, %s3
  %s6 = scalar_select 0, %s5, %s3
  $region1: #{tpu_custom_call.1} parent=0
    #allocation2 [shape = 'u8[8192]{0}', space=vmem, size = 0x2000, scoped, tag = 'input window, operand 0']
    #allocation3 [shape = 's32[2]{0}', space=sflag, size = 0x8, scoped, tag = 'scoped memory for tpu_custom_call.1']
    #allocation4 [shape = 's32[2]{0}', space=sflag, size = 0x8, scoped, tag = 'scoped memory for tpu_custom_call.1']
    #allocation5 [shape = 'u8[8192]{0}', space=vmem, size = 0x2000, scoped, tag = 'input window, operand 1']
    #allocation6 [shape = 's32[2]{0}', space=sflag, size = 0x8, scoped, tag = 'scoped memory for tpu_custom_call.1']
    #allocation7 [shape = 'u8[8192]{0}', space=vmem, size = 0x2000, scoped, tag = 'output window, operand 0']
    %7 = vsyncpa [#allocation3], 0
    %s8 = scalar_lea.sflag [#allocation3], 1
    %9 = vsyncpa %s8, 0
    %10 = vsyncpa [#allocation6], 0
    %s11 = scalar_lea.sflag [#allocation6], 1
    %12 = vsyncpa %s11, 0
    %13 = vsyncpa [#allocation4], 0
    %s14 = scalar_lea.sflag [#allocation4], 1
    %15 = vsyncpa %s14, 0
    loop: start=0, step=1, limit=4
    $region2: #{tpu_custom_call.1} parent=1 // loop_pre_header
      _
    $region3: #{tpu_custom_call.1} parent=1 // loop_header
      %s17 = sphi 0, %s21
      %p18 = scmp.ge.s32.totalorder %s17, 4
      %s27 = sphi 0, %s29
      %s30 = sphi 0, %s27
      %s31 = sphi 0, %s30
      %s47 = sphi 0, %s31
      %s53 = sphi 0, %s55
      %s56 = sphi 0, %s53
      %s57 = sphi 0, %s56
      %s73 = sphi 0, %s57
      %s79 = sphi 0, %s81
      %s82 = sphi 0, %s79
      %s83 = sphi 0, %s82
      %s99 = sphi 0, %s83
    $region4: #{tpu_custom_call.1} parent=1 // loop_header_branch
      %20 = sbr.rel (%p18) target = $region8
    $region5: #{tpu_custom_call.1} parent=1 // loop_body
      %s22 = ssub.s32 %s17, 1
      %s23 = ssub.s32 %s17, 2
      %s24 = sadd.s32 %s17, 1
      %s25 = ssub.s32 %s17, %s24
      %p26 = scmp.eq.s32.totalorder %s25, 0
      %s28 = sadd.s32 %s27, 1
      %s29 = scalar_select %p26, %s27, %s28
      %p32 = pneg %p26
      %p33 = scmp.eq.s32.totalorder %s17, 1
      %p34 = por %p32, %p33
      %p35 = scmp.ne.s32.totalorder %s27, %s30
      %p36 = scmp.eq.s32.totalorder %s17, 0
      %p37 = por %p35, %p36
      %p38 = scmp.ne.s32.totalorder %s27, %s30
      %p39 = scmp.eq.s32.totalorder %s22, 1
      %p40 = por %p38, %p39
      %p41 = scmp.ne.s32.totalorder %s30, %s31
      %p42 = scmp.eq.s32.totalorder %s22, 0
      %p43 = por %p41, %p42
      %p44 = scmp.ne.s32.totalorder %s30, %s31
      %p45 = scmp.eq.s32.totalorder %s23, 1
      %p46 = por %p44, %p45
      %p48 = scmp.ne.s32.totalorder %s31, %s47
      %p49 = scmp.eq.s32.totalorder %s23, 0
      %p50 = por %p48, %p49
      %s51 = ssub.s32 %s17, %s24
      %p52 = scmp.eq.s32.totalorder %s51, 0
      %s54 = sadd.s32 %s53, 1
      %s55 = scalar_select %p52, %s53, %s54
      %p58 = pneg %p52
      %p59 = scmp.eq.s32.totalorder %s17, 1
      %p60 = por %p58, %p59
      %p61 = scmp.ne.s32.totalorder %s53, %s56
      %p62 = scmp.eq.s32.totalorder %s17, 0
      %p63 = por %p61, %p62
      %p64 = scmp.ne.s32.totalorder %s53, %s56
      %p65 = scmp.eq.s32.totalorder %s22, 1
      %p66 = por %p64, %p65
      %p67 = scmp.ne.s32.totalorder %s56, %s57
      %p68 = scmp.eq.s32.totalorder %s22, 0
      %p69 = por %p67, %p68
      %p70 = scmp.ne.s32.totalorder %s56, %s57
      %p71 = scmp.eq.s32.totalorder %s23, 1
      %p72 = por %p70, %p71
      %p74 = scmp.ne.s32.totalorder %s57, %s73
      %p75 = scmp.eq.s32.totalorder %s23, 0
      %p76 = por %p74, %p75
      %s77 = ssub.s32 %s17, %s24
      %p78 = scmp.eq.s32.totalorder %s77, 0
      %s80 = sadd.s32 %s79, 1
      %s81 = scalar_select %p78, %s79, %s80
      %p84 = pneg %p78
      %p85 = scmp.eq.s32.totalorder %s17, 1
      %p86 = por %p84, %p85
      %p87 = scmp.ne.s32.totalorder %s79, %s82
      %p88 = scmp.eq.s32.totalorder %s17, 0
      %p89 = por %p87, %p88
      %p90 = scmp.ne.s32.totalorder %s79, %s82
      %p91 = scmp.eq.s32.totalorder %s22, 1
      %p92 = por %p90, %p91
      %p93 = scmp.ne.s32.totalorder %s82, %s83
      %p94 = scmp.eq.s32.totalorder %s22, 0
      %p95 = por %p93, %p94
      %p96 = scmp.ne.s32.totalorder %s82, %s83
      %p97 = scmp.eq.s32.totalorder %s23, 1
      %p98 = por %p96, %p97
      %p100 = scmp.ne.s32.totalorder %s83, %s99
      %p101 = scmp.eq.s32.totalorder %s23, 0
      %p102 = por %p100, %p101
      %p103 = scmp.le.s32.totalorder 1, %s17
      %p104 = scmp.lt.s32.totalorder %s17, 3
      %p105 = pnand %p103, %p104
      %p106 = pneg %p105
      // Predicated region
      $region9: #{tpu_custom_call.1} parent=5 // pred_check
        _
      $region10: #{tpu_custom_call.1} parent=5 // pred_check_branch
        %108 = sbr.rel (%p105) target = $region12
      $region11: #{tpu_custom_call.1} parent=5 // pred_region
        %s109 = ssub.s32 %s17, 1
      $region12: #{tpu_custom_call.1} parent=5 // pred_fallthru
        _
      %p110 = scmp.lt.s32.totalorder %s17, 2
      // Predicated region
      $region13: #{tpu_custom_call.1} parent=5 // pred_check
        %p111 = pneg %p110
      $region14: #{tpu_custom_call.1} parent=5 // pred_check_branch
        %113 = sbr.rel (%p111) target = $region16
      $region15: #{tpu_custom_call.1} parent=5 // pred_region
        // Predicated region
        $region17: #{tpu_custom_call.1} parent=15 // pred_check
          %p114 = pneg %p37
        $region18: #{tpu_custom_call.1} parent=15 // pred_check_branch
          %116 = sbr.rel (%p114) target = $region20
        $region19: #{tpu_custom_call.1} parent=15 // pred_region
          %s117 = sand.u32 %s27, 1
          %s118 = scalar_lea.sflag [#allocation3], %s117
          %s119 = sand.u32 %s27, 1
          %s120 = smul.addr %s119, 8
          %s121 = scalar_lea.vmem [#allocation2], %s120
          %s123 = ssub.s32 128, 128
          %124 = vsyncadd %s118, %s123
          %s125 = smul.addr %s17, 128
          %s126 = scalar_lea.hbm %s0, %s125
          %s128 = sshll.u32 %s121, 4
          %s129 = int_to_ptr.vmem [resolvable:$true] %s128
          %131 = dma.hbm_to_vmem [thread:$0]  %s126, 128, %s129, %s118
        $region20: #{tpu_custom_call.1} parent=15 // pred_fallthru
          _
        // Predicated region
        $region21: #{tpu_custom_call.1} parent=15 // pred_check
          %p132 = pneg %p63
        $region22: #{tpu_custom_call.1} parent=15 // pred_check_branch
          %134 = sbr.rel (%p132) target = $region24
        $region23: #{tpu_custom_call.1} parent=15 // pred_region
          %s135 = sand.u32 %s53, 1
          %s136 = scalar_lea.sflag [#allocation6], %s135
          %s137 = sand.u32 %s53, 1
          %s138 = smul.addr %s137, 8
          %s139 = scalar_lea.vmem [#allocation5], %s138
          %s141 = ssub.s32 128, 128
          %142 = vsyncadd %s136, %s141
          %s143 = smul.addr %s17, 128
          %s144 = scalar_lea.hbm %s1, %s143
          %s146 = sshll.u32 %s139, 4
          %s147 = int_to_ptr.vmem [resolvable:$true] %s146
          %149 = dma.hbm_to_vmem [thread:$0]  %s144, 128, %s147, %s136
        $region24: #{tpu_custom_call.1} parent=15 // pred_fallthru
          _
      $region16: #{tpu_custom_call.1} parent=5 // pred_fallthru
        _
      %p150 = scmp.le.s32.totalorder 1, %s17
      %p151 = scmp.lt.s32.totalorder %s17, 3
      %p152 = pnand %p150, %p151
      %p153 = pneg %p152
      // Predicated region
      $region25: #{tpu_custom_call.1} parent=5 // pred_check
        _
      $region26: #{tpu_custom_call.1} parent=5 // pred_check_branch
        %155 = sbr.rel (%p152) target = $region28
      $region27: #{tpu_custom_call.1} parent=5 // pred_region
        %s156 = ssub.s32 %s17, 1
        %s157 = sand.u32 %s30, 1
        %s158 = scalar_lea.sflag [#allocation3], %s157
        %s159 = sand.u32 %s30, 1
        %s160 = smul.addr %s159, 8
        %s161 = scalar_lea.vmem [#allocation2], %s160
        // Predicated region
        $region29: #{tpu_custom_call.1} parent=27 // pred_check
          %p162 = pneg %p43
        $region30: #{tpu_custom_call.1} parent=27 // pred_check_branch
          %164 = sbr.rel (%p162) target = $region32
        $region31: #{tpu_custom_call.1} parent=27 // pred_region
          %165 = dma.done %s158, 128
        $region32: #{tpu_custom_call.1} parent=27 // pred_fallthru
          _
        %s166 = sand.u32 %s56, 1
        %s167 = scalar_lea.sflag [#allocation6], %s166
        %s168 = sand.u32 %s56, 1
        %s169 = smul.addr %s168, 8
        %s170 = scalar_lea.vmem [#allocation5], %s169
        // Predicated region
        $region33: #{tpu_custom_call.1} parent=27 // pred_check
          %p171 = pneg %p69
        $region34: #{tpu_custom_call.1} parent=27 // pred_check_branch
          %173 = sbr.rel (%p171) target = $region36
        $region35: #{tpu_custom_call.1} parent=27 // pred_region
          %174 = dma.done %s167, 128
        $region36: #{tpu_custom_call.1} parent=27 // pred_fallthru
          _
        %s175 = sand.u32 %s30, 1
        %s176 = scalar_lea.sflag [#allocation3], %s175
        %s177 = sand.u32 %s30, 1
        %s178 = smul.addr %s177, 8
        %s179 = scalar_lea.vmem [#allocation2], %s178
        %p180 = pneg %p43
        %p181 = pneg %p40
        %s182 = sand.u32 %s56, 1
        %s183 = scalar_lea.sflag [#allocation6], %s182
        %s184 = sand.u32 %s56, 1
        %s185 = smul.addr %s184, 8
        %s186 = scalar_lea.vmem [#allocation5], %s185
        %p187 = pneg %p69
        %p188 = pneg %p66
        %p189 = pneg %p95
        %p190 = pneg %p92
        %s191 = sand.u32 %s82, 1
        %s192 = scalar_lea.sflag [#allocation4], %s191
        %s193 = sand.u32 %s82, 1
        %s194 = smul.addr %s193, 8
        %s195 = scalar_lea.vmem [#allocation7], %s194
        %v196 = vld [vmem:[%s161] sm:$0xff]
        %v197 = vld [vmem:[%s170] sm:$0xff]
        %v198 = vsub.f32 1.0, %v197
        %v199 = vmul.f32 %v198, %v196
        %200 = vst [vmem:[%s195] sm:$0xff] %v199
        %s201 = sand.u32 %s82, 1
        %s202 = scalar_lea.sflag [#allocation4], %s201
        %s203 = sand.u32 %s82, 1
        %s204 = smul.addr %s203, 8
        %s205 = scalar_lea.vmem [#allocation7], %s204
        // Predicated region
        $region37: #{tpu_custom_call.1} parent=27 // pred_check
          %p206 = pneg %p92
        $region38: #{tpu_custom_call.1} parent=27 // pred_check_branch
          %208 = sbr.rel (%p206) target = $region40
        $region39: #{tpu_custom_call.1} parent=27 // pred_region
          %s210 = ssub.s32 128, 128
          %211 = vsyncadd %s202, %s210
          %s212 = smul.addr %s22, 128
          %s213 = scalar_lea.hbm %s2, %s212
          %s215 = sshll.u32 %s205, 4
          %s216 = int_to_ptr.vmem [resolvable:$true] %s215
          %218 = dma.vmem_to_hbm [thread:$0]  %s216, 128, %s213, %s202
        $region40: #{tpu_custom_call.1} parent=27 // pred_fallthru
          _
      $region28: #{tpu_custom_call.1} parent=5 // pred_fallthru
        _
      %p219 = scmp.le.s32.totalorder 2, %s17
      // Predicated region
      $region41: #{tpu_custom_call.1} parent=5 // pred_check
        %p220 = pneg %p219
      $region42: #{tpu_custom_call.1} parent=5 // pred_check_branch
        %222 = sbr.rel (%p220) target = $region44
      $region43: #{tpu_custom_call.1} parent=5 // pred_region
        %s223 = ssub.s32 %s17, 2
        // Predicated region
        $region45: #{tpu_custom_call.1} parent=43 // pred_check
          %p224 = pneg %p98
        $region46: #{tpu_custom_call.1} parent=43 // pred_check_branch
          %226 = sbr.rel (%p224) target = $region48
        $region47: #{tpu_custom_call.1} parent=43 // pred_region
          %s227 = sand.u32 %s83, 1
          %s228 = scalar_lea.sflag [#allocation4], %s227
          %s229 = sand.u32 %s83, 1
          %s230 = smul.addr %s229, 8
          %s231 = scalar_lea.vmem [#allocation7], %s230
          %232 = dma.done %s228, 128
        $region48: #{tpu_custom_call.1} parent=43 // pred_fallthru
          _
      $region44: #{tpu_custom_call.1} parent=5 // pred_fallthru
        _
    $region6: #{tpu_custom_call.1} parent=1 // loop_footer
      %s21 = sadd.s32 1, %s17
    $region7: #{tpu_custom_call.1} parent=1 // loop_footer_branch
      %16 = sbr.rel target = $region3
    $region8: #{tpu_custom_call.1} parent=1 // loop_exit
      _
    %233 = vsyncpa [#allocation3], 1
    %s234 = scalar_lea.sflag [#allocation3], 1
    %235 = vsyncpa %s234, 1
    %236 = vsyncpa [#allocation6], 1
    %s237 = scalar_lea.sflag [#allocation6], 1
    %238 = vsyncpa %s237, 1
    %239 = vsyncpa [#allocation4], 1
    %s240 = scalar_lea.sflag [#allocation4], 1
    %241 = vsyncpa %s240, 1

</llo_original>
